<compile_context>
chip_gen: v7x
topology: tpu7x:2x2x1
jax: 0.10.0
libtpu: 0.0.40
codegen_flags: <defaults>
</compile_context>

<pallas_src>
import functools

import jax
import jax.numpy as jnp
from jax.experimental import pallas as pl
from jax.experimental.pallas import tpu as pltpu


def _round_up(x: int, m: int) -> int:
    return (x + m - 1) // m * m


def listnet_kernel(xT_ref, w1_ref, b1_ref, w2_ref, b2_ref, o_ref):
    # xT_ref: (F, TM)  one tile of docs, transposed (docs along lanes)
    # w1_ref: (H, F)   torch layout, VMEM-resident across grid steps
    # b1_ref: (H, 1)   broadcast over lanes
    # w2_ref: (H, 1)   second-layer weights as a column, broadcast over lanes
    # b2_ref: (1, 1)   scalar bias in SMEM
    # o_ref : (1, TM)  lane-dense scores for this tile
    hT = jnp.dot(w1_ref[...], xT_ref[...],
                 preferred_element_type=jnp.float32)            # MXU: (H, TM)
    hT = jnp.maximum(hT + b1_ref[...], 0.0)                      # VPU
    # Second layer as elementwise multiply + sublane reduction -> stays lane-dense.
    s = jnp.sum(hT * w2_ref[...], axis=0, keepdims=True)         # VPU + XLU: (1, TM)
    o_ref[...] = (s + b2_ref[0, 0]).astype(o_ref.dtype)


@functools.partial(jax.jit, static_argnames=("block_rows", "use_bf16"))
def listnet_forward(x, w1, b1, w2, b2, *, block_rows: int = 512,
                    use_bf16: bool = False):
    """ListNet forward pass.

    x : (N, F) float32            documents to score
    w1: (H, F), b1: (H,)          first Linear (torch layout)
    w2: (1, H), b2: (1,)          second Linear (torch layout)
    returns logits of shape (N, 1) float32.
    """
    n, f = x.shape
    h = w1.shape[0]

    tm = min(_round_up(max(block_rows, 128), 128), _round_up(n, 128))
    n_pad = _round_up(n, tm)
    n_tiles = n_pad // tm

    # Lane-dense transposed activations: (F, N_pad); zero-pad extra docs.
    xT = jnp.zeros((f, n_pad), jnp.float32).at[:, :n].set(x.T)

    w1_k = w1
    if use_bf16:  # v6e / v7x: bf16-native MXU + half the DMA bytes; f32 accumulation.
        xT = xT.astype(jnp.bfloat16)
        w1_k = w1_k.astype(jnp.bfloat16)

    b1_col = b1.reshape(h, 1).astype(jnp.float32)
    w2_col = w2.reshape(h, 1).astype(jnp.float32)   # (1, H) -> (H, 1)
    b2_s = b2.reshape(1, 1).astype(jnp.float32)

    itemsize = xT.dtype.itemsize
    cost = pl.CostEstimate(
        flops=2 * n_pad * f * h + 3 * n_pad * h,
        transcendentals=0,
        bytes_accessed=int(xT.size * itemsize + w1_k.size * itemsize
                           + (b1_col.size + w2_col.size + 1 + n_pad) * 4),
    )

    out = pl.pallas_call(
        listnet_kernel,
        out_shape=jax.ShapeDtypeStruct((1, n_pad), jnp.float32),
        grid=(n_tiles,),
        in_specs=[
            pl.BlockSpec((f, tm), lambda i: (0, i)),            # xT doc tile
            pl.BlockSpec((h, f), lambda i: (0, 0)),             # W1 (resident)
            pl.BlockSpec((h, 1), lambda i: (0, 0)),             # b1 (resident)
            pl.BlockSpec((h, 1), lambda i: (0, 0)),             # w2 col (resident)
            pl.BlockSpec(memory_space=pltpu.MemorySpace.SMEM),  # b2 scalar
        ],
        out_specs=pl.BlockSpec((1, tm), lambda i: (0, i)),      # lane-dense scores
        compiler_params=pltpu.CompilerParams(
            dimension_semantics=("parallel",),
        ),
        cost_estimate=cost,
    )(xT, w1_k, b1_col, w2_col, b2_s)

    return out[0, :n].reshape(n, 1)


def init_listnet_params(key, num_input_features, hidden_dim):
    """torch.nn.Linear default init: U(-1/sqrt(fan_in), 1/sqrt(fan_in)), torch layout."""
    k1, k2, k3, k4 = jax.random.split(key, 4)
    bound1 = 1.0 / (num_input_features ** 0.5)
    bound2 = 1.0 / (hidden_dim ** 0.5)
    w1 = jax.random.uniform(k1, (hidden_dim, num_input_features),
                            minval=-bound1, maxval=bound1, dtype=jnp.float32)
    b1 = jax.random.uniform(k2, (hidden_dim,),
                            minval=-bound1, maxval=bound1, dtype=jnp.float32)
    w2 = jax.random.uniform(k3, (1, hidden_dim),
                            minval=-bound2, maxval=bound2, dtype=jnp.float32)
    b2 = jax.random.uniform(k4, (1,),
                            minval=-bound2, maxval=bound2, dtype=jnp.float32)
    return w1, b1, w2, b2


if __name__ == "__main__":
    num_input_features = 32
    hidden_dim = 32

    key = jax.random.PRNGKey(0)
    kx, kp, kx2 = jax.random.split(key, 3)
    w1, b1, w2, b2 = init_listnet_params(kp, num_input_features, hidden_dim)

    def ref_fwd(xx):  # pure-JAX reference mirroring the torch module
        return jnp.maximum(xx @ w1.T + b1, 0.0) @ w2.T + b2

    # 1) small list of 8 docs (single 128-row tile, padded)
    x_small = jax.random.normal(kx, (8, num_input_features), dtype=jnp.float32)
    logits = listnet_forward(x_small, w1, b1, w2, b2)
    jax.block_until_ready(logits)
    assert logits.shape == (8, 1)
    assert jnp.allclose(logits, ref_fwd(x_small), atol=1e-5, rtol=1e-5)

    # 2) batched multi-tile grid (300 docs -> three 128-row tiles, tail padded)
    x_big = jax.random.normal(kx2, (300, num_input_features), dtype=jnp.float32)
    logits_big = listnet_forward(x_big, w1, b1, w2, b2, block_rows=128)
    jax.block_until_ready(logits_big)
    assert logits_big.shape == (300, 1)
    assert jnp.allclose(logits_big, ref_fwd(x_big), atol=1e-5, rtol=1e-5)

    # 3) bf16 input/weight path (v6e / v7x friendly), f32 MXU accumulation
    logits_bf16 = listnet_forward(x_big, w1, b1, w2, b2, block_rows=128, use_bf16=True)
    jax.block_until_ready(logits_bf16)
    assert jnp.allclose(logits_bf16, ref_fwd(x_big), atol=5e-2, rtol=5e-2)

    print("KERNEL_OK")
</pallas_src>

<mosaic_0001>
module attributes {stable_mosaic.version = 11 : i64} {
  func.func @listnet_kernel(%arg0: i32, %arg1: memref<32x128xf32, #tpu.memory_space<vmem>>, %arg2: memref<32x32xf32, #tpu.memory_space<vmem>>, %arg3: memref<32x1xf32, #tpu.memory_space<vmem>>, %arg4: memref<32x1xf32, #tpu.memory_space<vmem>>, %arg5: memref<1x1xf32, #tpu.memory_space<smem>>, %arg6: memref<1x128xf32, #tpu.memory_space<vmem>>) attributes {dimension_semantics = [#tpu.dimension_semantics<parallel>], iteration_bounds = array<i64: 1>, scalar_prefetch = 0 : i64, scratch_operands = 0 : i64, tpu.core_type = #tpu.core_type<tc>, window_params = [{transform_indices = @transform_0, window_bounds = array<i64: 32, 128>}, {pipeline_mode = #tpu.pipeline_mode<synchronous>, transform_indices = @transform_1, window_bounds = array<i64: 32, 32>}, {pipeline_mode = #tpu.pipeline_mode<synchronous>, transform_indices = @transform_2, window_bounds = array<i64: 32, 1>}, {pipeline_mode = #tpu.pipeline_mode<synchronous>, transform_indices = @transform_3, window_bounds = array<i64: 32, 1>}, {transform_indices = @transform_4, window_bounds = array<i64: 1, 1>}, {transform_indices = @transform_5, window_bounds = array<i64: 1, 128>}]} {
    %c0 = arith.constant 0 : index
    %c0_0 = arith.constant 0 : index
    %0 = vector.load %arg2[%c0, %c0_0] : memref<32x32xf32, #tpu.memory_space<vmem>>, vector<32x32xf32>
    %c0_1 = arith.constant 0 : index
    %c0_2 = arith.constant 0 : index
    %1 = vector.load %arg1[%c0_1, %c0_2] : memref<32x128xf32, #tpu.memory_space<vmem>>, vector<32x128xf32>
    %cst = arith.constant dense<0.000000e+00> : vector<32x128xf32>
    %2 = tpu.matmul %0, %1, %cst {dimension_numbers = #tpu.dot_dimension_numbers<[1], [0], [0], [1], [0, 0, 1, 1], [], []>} : vector<32x32xf32>, vector<32x128xf32>, vector<32x128xf32> -> vector<32x128xf32>
    %c0_3 = arith.constant 0 : index
    %c0_4 = arith.constant 0 : index
    %3 = vector.load %arg3[%c0_3, %c0_4] : memref<32x1xf32, #tpu.memory_space<vmem>>, vector<32x1xf32>
    %4 = vector.broadcast %3 : vector<32x1xf32> to vector<32x128xf32>
    %5 = arith.addf %2, %4 : vector<32x128xf32>
    %cst_5 = arith.constant 0.000000e+00 : f32
    %6 = vector.broadcast %cst_5 : f32 to vector<32x128xf32>
    %7 = arith.maximumf %5, %6 : vector<32x128xf32>
    %c0_6 = arith.constant 0 : index
    %c0_7 = arith.constant 0 : index
    %8 = vector.load %arg4[%c0_6, %c0_7] : memref<32x1xf32, #tpu.memory_space<vmem>>, vector<32x1xf32>
    %9 = vector.broadcast %8 : vector<32x1xf32> to vector<32x128xf32>
    %10 = arith.mulf %7, %9 : vector<32x128xf32>
    %cst_8 = arith.constant dense<0.000000e+00> : vector<128xf32>
    %11 = vector.multi_reduction <add>, %10, %cst_8 [0] : vector<32x128xf32> to vector<128xf32>
    %12 = vector.shape_cast %11 : vector<128xf32> to vector<1x128xf32>
    %c0_9 = arith.constant 0 : index
    %c0_10 = arith.constant 0 : index
    %13 = memref.load %arg5[%c0_9, %c0_10] : memref<1x1xf32, #tpu.memory_space<smem>>
    %14 = vector.broadcast %13 : f32 to vector<1x128xf32>
    %15 = arith.addf %12, %14 : vector<1x128xf32>
    %c0_11 = arith.constant 0 : index
    %c0_12 = arith.constant 0 : index
    %16 = vector.load %arg6[%c0_11, %c0_12] : memref<1x128xf32, #tpu.memory_space<vmem>>, vector<1x128xf32>
    tpu.vector_store %arg6[%c0_11, %c0_12], %15 {strides = array<i32>} : memref<1x128xf32, #tpu.memory_space<vmem>>, vector<1x128xf32>,
    return
  }
  func.func @transform_0(%arg0: i32) -> (i32, i32) {
    %c0_i32 = arith.constant 0 : i32
    %c0_i32_0 = arith.constant 0 : i32
    return %c0_i32, %arg0 : i32, i32
  }
  func.func @transform_1(%arg0: i32) -> (i32, i32) {
    %c0_i32 = arith.constant 0 : i32
    %c0_i32_0 = arith.constant 0 : i32
    %c0_i32_1 = arith.constant 0 : i32
    return %c0_i32, %c0_i32_0 : i32, i32
  }
  func.func @transform_2(%arg0: i32) -> (i32, i32) {
    %c0_i32 = arith.constant 0 : i32
    %c0_i32_0 = arith.constant 0 : i32
    %c0_i32_1 = arith.constant 0 : i32
    return %c0_i32, %c0_i32_0 : i32, i32
  }
  func.func @transform_3(%arg0: i32) -> (i32, i32) {
    %c0_i32 = arith.constant 0 : i32
    %c0_i32_0 = arith.constant 0 : i32
    %c0_i32_1 = arith.constant 0 : i32
    return %c0_i32, %c0_i32_0 : i32, i32
  }
  func.func @transform_4(%arg0: i32) -> (i32, i32) {
    %c0_i32 = arith.constant 0 : i32
    %c0_i32_0 = arith.constant 0 : i32
    %c0_i32_1 = arith.constant 0 : i32
    return %c0_i32, %c0_i32_0 : i32, i32
  }
  func.func @transform_5(%arg0: i32) -> (i32, i32) {
    %c0_i32 = arith.constant 0 : i32
    %c0_i32_0 = arith.constant 0 : i32
    return %c0_i32, %arg0 : i32, i32
  }
}

</mosaic_0001>

<llo_original>
// kernel: listnet_forward.1
$region0: #{listnet_forward.1}
  #allocation0 [shape = 'u32[]', space=smem, size = 0x4, offset = 0x4, fixed_abs, tag = 'smem constant byte address 0x4 - core index']
  #allocation1 [shape = 'u32[144,128]{1,0:T(1,128)}', space=vmem, size = 0x12000, scoped, tag = 'internal scratch']
  #allocation2 [shape = 'f32[1,1]{1,0:T(1,128)S(6)}', space=smem, size = 0x200, scoped, tag = 'scoped memory for listnet_forward.1']
  %s0 = inlined_call_operand.vmem [shape: f32[32,128], index: 0, kind: input, shape index: {}]
  %s1 = inlined_call_operand.vmem [shape: f32[32,32], index: 1, kind: input, shape index: {}]
  %s2 = inlined_call_operand.vmem [shape: f32[32,1], index: 2, kind: input, shape index: {}]
  %s3 = inlined_call_operand.vmem [shape: f32[32,1], index: 3, kind: input, shape index: {}]
  %s4 = inlined_call_operand.<no memory space> [shape: f32[1,1], index: 4, kind: input, shape index: {}]
  %s5 = inlined_call_operand.vmem [shape: f32[1,128], index: 5, kind: output, shape index: {}]
  %s6 = sld [smem:[#allocation0]]
  $region30: #{listnet_forward.1} parent=0
    _
  %s8 = ssub.s32 1, %s6
  %s9 = scalar_select 0, %s8, %s6
  %10 = sst [smem:[#allocation2]] %s4
  // Predicated region
  $region2: #{listnet_forward.1} parent=0 // pred_check
    _
  $region3: #{listnet_forward.1} parent=0 // pred_check_branch
    %12 = sbr.rel (0) target = $region5
  $region4: #{listnet_forward.1} parent=0 // pred_region
    _
  $region5: #{listnet_forward.1} parent=0 // pred_fallthru
    _
  // Predicated region
  $region6: #{listnet_forward.1} parent=0 // pred_check
    _
  $region7: #{listnet_forward.1} parent=0 // pred_check_branch
    %14 = sbr.rel (0) target = $region9
  $region8: #{listnet_forward.1} parent=0 // pred_region
    _
  $region9: #{listnet_forward.1} parent=0 // pred_fallthru
    _
  // Predicated region
  $region10: #{listnet_forward.1} parent=0 // pred_check
    _
  $region11: #{listnet_forward.1} parent=0 // pred_check_branch
    %16 = sbr.rel (0) target = $region13
  $region12: #{listnet_forward.1} parent=0 // pred_region
    _
  $region13: #{listnet_forward.1} parent=0 // pred_fallthru
    _
  // Predicated region
  $region14: #{listnet_forward.1} parent=0 // pred_check
    _
  $region15: #{listnet_forward.1} parent=0 // pred_check_branch
    %18 = sbr.rel (0) target = $region17
  $region16: #{listnet_forward.1} parent=0 // pred_region
    _
  $region17: #{listnet_forward.1} parent=0 // pred_fallthru
    _
  // Predicated region
  $region18: #{listnet_forward.1} parent=0 // pred_check
    _
  $region19: #{listnet_forward.1} parent=0 // pred_check_branch
    %20 = sbr.rel (0) target = $region21
  $region20: #{listnet_forward.1} parent=0 // pred_region
    _
  $region21: #{listnet_forward.1} parent=0 // pred_fallthru
    _
  %v21 = vld [vmem:[%s1] sm:$0xff]
  %v22 = vld [vmem:[%s1 + $0x8] sm:$0xff]
  %v23 = vld [vmem:[%s1 + $0x10] sm:$0xff]
  %v24 = vld [vmem:[%s1 + $0x18] sm:$0xff]
  %v25 = vld [vmem:[%s0] sm:$0xff]
  %v26 = vld [vmem:[%s0 + $0x8] sm:$0xff]
  %v27 = vld [vmem:[%s0 + $0x10] sm:$0xff]
  %v28 = vld [vmem:[%s0 + $0x18] sm:$0xff]
  %v29 = vld [vmem:[%s2] sm:$0xff]
  %v30 = vld [vmem:[%s2 + $0x8] sm:$0xff]
  %v31 = vld [vmem:[%s2 + $0x10] sm:$0xff]
  %v32 = vld [vmem:[%s2 + $0x18] sm:$0xff]
  %34 = vset.pattern.permute.xlu0 0
  %35 = vperm.xlu0 %34, %v29
  %v36 = vpop.permute.xlu0 %35
  %39 = vset.pattern.permute.xlu0 0
  %40 = vperm.xlu0 %39, %v30
  %v41 = vpop.permute.xlu0 %40
  %44 = vset.pattern.permute.xlu0 0
  %45 = vperm.xlu0 %44, %v31
  %v46 = vpop.permute.xlu0 %45
  %49 = vset.pattern.permute.xlu0 0
  %50 = vperm.xlu0 %49, %v32
  %v51 = vpop.permute.xlu0 %50
  %vm53 = vcmask 261120
  %v55 = vsel %vm53, %v21, 0
  %v58 = vsel %vm53, %v22, 0
  %v61 = vsel %vm53, %v23, 0
  %v64 = vsel %vm53, %v24, 0
  %66 = vmatprep.subr.mxu0 0.0
  %67 = vmatpush1.msra.mxu0 %v25
  %68 = vmatprep.subr.mxu0 0.0
  %69 = vmatpush1.msra.mxu0 %v26
  %70 = vmatprep.subr.mxu0 0.0
  %71 = vmatpush1.msra.mxu0 %v27
  %72 = vmatprep.subr.mxu0 0.0
  %73 = vmatpush1.msra.mxu0 %v28
  %74 = vmatprep.subr.mxu0 0.0
  %75 = vmatpush1.msra.mxu0 0.0
  %76 = vmatprep.subr.mxu0 0.0
  %77 = vmatpush1.msra.mxu0 0.0
  %78 = vmatprep.subr.mxu0 0.0
  %79 = vmatpush1.msra.mxu0 0.0
  %80 = vmatprep.subr.mxu0 0.0
  %81 = vmatpush1.msra.mxu0 0.0
  %82 = vmatprep.subr.mxu0 0.0
  %83 = vmatpush1.msra.mxu0 0.0
  %84 = vmatprep.subr.mxu0 0.0
  %85 = vmatpush1.msra.mxu0 0.0
  %86 = vmatprep.subr.mxu0 0.0
  %87 = vmatpush1.msra.mxu0 0.0
  %88 = vmatprep.subr.mxu0 0.0
  %89 = vmatpush1.msra.mxu0 0.0
  %90 = vmatprep.subr.mxu0 0.0
  %91 = vmatpush1.msra.mxu0 0.0
  %92 = vmatprep.subr.mxu0 0.0
  %93 = vmatpush1.msra.mxu0 0.0
  %94 = vmatprep.subr.mxu0 0.0
  %95 = vmatpush1.msra.mxu0 0.0
  %96 = vmatprep.subr.mxu0 0.0
  %97 = vmatpush1.msra.mxu0 0.0
  %98 = vmatprep.subr.mxu0 0.0
  %99 = vmatpush1.msra.mxu0 0.0
  %100 = vmatprep.subr.mxu0 0.0
  %101 = vmatpush1.msra.mxu0 0.0
  %102 = vmatprep.subr.mxu0 0.0
  %103 = vmatpush1.msra.mxu0 0.0
  %104 = vmatprep.subr.mxu0 0.0
  %105 = vmatpush1.msra.mxu0 0.0
  %106 = vmatprep.subr.mxu0 0.0
  %107 = vmatpush1.msra.mxu0 0.0
  %108 = vmatprep.subr.mxu0 0.0
  %109 = vmatpush1.msra.mxu0 0.0
  %110 = vmatprep.subr.mxu0 0.0
  %111 = vmatpush1.msra.mxu0 0.0
  %112 = vmatprep.subr.mxu0 0.0
  %113 = vmatpush1.msra.mxu0 0.0
  %114 = vmatprep.subr.mxu0 0.0
  %115 = vmatpush1.msra.mxu0 0.0
  %116 = vmatprep.subr.mxu0 0.0
  %117 = vmatpush1.msra.mxu0 0.0
  %118 = vmatprep.subr.mxu0 0.0
  %119 = vmatpush1.msra.mxu0 0.0
  %120 = vmatprep.subr.mxu0 0.0
  %121 = vmatpush1.msra.mxu0 0.0
  %122 = vmatprep.subr.mxu0 0.0
  %123 = vmatpush1.msra.mxu0 0.0
  %124 = vmatprep.subr.mxu0 0.0
  %125 = vmatpush1.msra.mxu0 0.0
  %126 = vmatprep.subr.mxu0 0.0
  %127 = vmatpush1.msra.mxu0 0.0
  %128 = vmatprep.subr.mxu0 0.0
  %129 = vmatpush1.msra.mxu0 0.0
  %130 = vmatprep.mubr.f32.mxu0 0.0
  %131 = vmatmul.mubr.f32.gmra.mrb[0].mxu0 %v55
  %v132 = vpop.f32.mrb[0].mxu0
  %v133 = vadd.f32 %v36, %v132
  %v134 = vpop.f32.mrb[0].mxu0
  %135 = vmatprep.mubr.f32.mxu0 0.0
  %136 = vmatmul.mubr.f32.gmra.mrb[0].mxu0 %v58
  %v137 = vpop.f32.mrb[0].mxu0
  %v138 = vadd.f32 %v41, %v137
  %v139 = vpop.f32.mrb[0].mxu0
  %140 = vmatprep.mubr.f32.mxu0 0.0
  %141 = vmatmul.mubr.f32.gmra.mrb[0].mxu0 %v61
  %v142 = vpop.f32.mrb[0].mxu0
  %v143 = vadd.f32 %v46, %v142
  %v144 = vpop.f32.mrb[0].mxu0
  %145 = vmatprep.mubr.f32.mxu0 0.0
  %146 = vmatmul.mubr.f32.gmra.mrb[0].mxu0 %v64
  %v147 = vpop.f32.mrb[0].mxu0
  %v148 = vadd.f32 %v51, %v147
  %v149 = vpop.f32.mrb[0].mxu0
  %150 = vdwg.mxu0
  %v151 = vmax.f32 %v133, 0.0
  %v152 = vmax.f32 %v138, 0.0
  %v153 = vmax.f32 %v143, 0.0
  %v154 = vmax.f32 %v148, 0.0
  %v155 = vld [vmem:[%s3] sm:$0xff]
  %v156 = vld [vmem:[%s3 + $0x8] sm:$0xff]
  %v157 = vld [vmem:[%s3 + $0x10] sm:$0xff]
  %v158 = vld [vmem:[%s3 + $0x18] sm:$0xff]
  %160 = vset.pattern.permute.xlu0 0
  %161 = vperm.xlu0 %160, %v155
  %v162 = vpop.permute.xlu0 %161
  %165 = vset.pattern.permute.xlu0 0
  %166 = vperm.xlu0 %165, %v156
  %v167 = vpop.permute.xlu0 %166
  %170 = vset.pattern.permute.xlu0 0
  %171 = vperm.xlu0 %170, %v157
  %v172 = vpop.permute.xlu0 %171
  %175 = vset.pattern.permute.xlu0 0
  %176 = vperm.xlu0 %175, %v158
  %v177 = vpop.permute.xlu0 %176
  %v179 = vmul.f32 %v151, %v162
  %v180 = vmul.f32 %v152, %v167
  %v181 = vmul.f32 %v153, %v172
  %v182 = vmul.f32 %v154, %v177
  %v183 = vadd.f32 %v179, %v180
  %v184 = vadd.f32 %v183, %v181
  %v185 = vadd.f32 %v184, %v182
  %v186 = vrot.slane %v185, 4
  %v187 = vadd.f32 %v185, %v186
  %v188 = vrot.slane %v187, 2
  %v189 = vadd.f32 %v187, %v188
  %v190 = vrot.slane %v189, 1
  %v191 = vadd.f32 %v189, %v190
  %s192 = sld [smem:[#allocation2]]
  %v193 = vstv %s192
  %v194 = vadd.f32 %v191, %v193
  %195 = vst [vmem:[%s5] sm:$0x1] %v194
  // Predicated region
  $region22: #{listnet_forward.1} parent=0 // pred_check
    _
  $region23: #{listnet_forward.1} parent=0 // pred_check_branch
    %197 = sbr.rel (0) target = $region25
  $region24: #{listnet_forward.1} parent=0 // pred_region
    _
  $region25: #{listnet_forward.1} parent=0 // pred_fallthru
    _
  // Predicated region
  $region26: #{listnet_forward.1} parent=0 // pred_check
    _
  $region27: #{listnet_forward.1} parent=0 // pred_check_branch
    %199 = sbr.rel (0) target = $region29
  $region28: #{listnet_forward.1} parent=0 // pred_region
    _
  $region29: #{listnet_forward.1} parent=0 // pred_fallthru
    _

</llo_original>
